<compile_context>
chip_gen: v7x
topology: tpu7x:2x2x1
jax: 0.10.0
libtpu: 0.0.40
codegen_flags: <defaults>
</compile_context>

<pallas_src>
import functools

import jax
import jax.numpy as jnp
from jax.experimental import pallas as pl
from jax.experimental.pallas import tpu as pltpu


def _focal_body(pred_ref, gt_ref, mask, out_ref):
    """Partial focal-loss sums for one (batch, hw-tile) block.

    pred_ref/gt_ref: (C, hw_tile); mask: (1, hw_tile) or None; out_ref: (3, 128).
    """
    pred = pred_ref[...].astype(jnp.float32)         # (C, hw_tile)
    gt = gt_ref[...].astype(jnp.float32)              # (C, hw_tile)

    is_pos = gt == 1.0
    is_neg = gt < 1.0

    # Single log for both branches (pos/neg are mutually exclusive).
    x = jnp.where(is_pos, pred, 1.0 - pred)
    logx = jnp.log(x)

    one_m_pred = 1.0 - pred
    omg = 1.0 - gt
    sq = omg * omg
    neg_w = sq * sq                                    # (1 - gt)^4 with 2 muls

    pos_term = logx * (one_m_pred * one_m_pred)
    neg_term = logx * (pred * pred) * neg_w

    pos_part = jnp.where(is_pos, pos_term, 0.0)
    neg_part = jnp.where(is_neg, neg_term, 0.0)

    if mask is None:
        cnt_part = is_pos.astype(jnp.float32)
    else:
        m = mask.astype(jnp.float32)                   # (1, hw_tile), broadcasts over C
        pos_part = pos_part * m
        neg_part = neg_part * m
        cnt_part = is_pos.astype(jnp.float32) * m

    pos_s = jnp.sum(pos_part)
    neg_s = jnp.sum(neg_part)
    cnt_s = jnp.sum(cnt_part)

    # Per-block partials, broadcast along lanes (wrapper reads lane 0).
    out_ref[0:1, :] = jnp.full((1, 128), pos_s, jnp.float32)
    out_ref[1:2, :] = jnp.full((1, 128), neg_s, jnp.float32)
    out_ref[2:3, :] = jnp.full((1, 128), cnt_s, jnp.float32)


def _masked_kernel(pred_ref, gt_ref, mask_ref, out_ref):
    _focal_body(pred_ref, gt_ref, mask_ref[...], out_ref)


def _unmasked_kernel(pred_ref, gt_ref, out_ref):
    _focal_body(pred_ref, gt_ref, None, out_ref)


def _choose_hw_tile(HW, C, itemsize, budget_bytes=4 << 20):
    """Largest spatial tile (multiple of 128 dividing HW) whose (C, tile) block fits the budget."""
    if C * HW * itemsize <= budget_bytes:
        return HW
    best = None
    t = 128
    while t <= HW:
        if HW % t == 0 and C * t * itemsize <= budget_bytes:
            best = t
        t += 128
    return best if best is not None else HW


@functools.partial(jax.jit, static_argnames=("has_mask", "hw_tile"))
def _focal_loss_impl(pred, gt, mask, *, has_mask, hw_tile=None):
    B, C, H, W = pred.shape
    HW = H * W

    pred3 = pred.reshape(B, C, HW)
    gt3 = gt.reshape(B, C, HW)

    if hw_tile is None:
        hw_tile = _choose_hw_tile(HW, C, jnp.dtype(pred.dtype).itemsize)
    # Fall back to a single full-HW block if the requested tile is invalid.
    if hw_tile != HW and (HW % hw_tile != 0 or hw_tile % 128 != 0):
        hw_tile = HW
    T = HW // hw_tile

    in_specs = [
        pl.BlockSpec((None, C, hw_tile), lambda b, t: (b, 0, t)),   # pred
        pl.BlockSpec((None, C, hw_tile), lambda b, t: (b, 0, t)),   # gt
    ]
    args = [pred3, gt3]
    if has_mask:
        in_specs.append(pl.BlockSpec((None, 1, hw_tile), lambda b, t: (b, 0, t)))  # mask
        args.append(mask.reshape(B, 1, HW))
        kernel = _masked_kernel
    else:
        kernel = _unmasked_kernel

    partials = pl.pallas_call(
        kernel,
        out_shape=jax.ShapeDtypeStruct((B, T, 3, 128), jnp.float32),
        grid_spec=pltpu.PrefetchScalarGridSpec(
            num_scalar_prefetch=0,
            grid=(B, T),
            in_specs=in_specs,
            out_specs=pl.BlockSpec((None, None, 3, 128), lambda b, t: (b, t, 0, 0)),
        ),
        compiler_params=pltpu.CompilerParams(
            dimension_semantics=("parallel", "parallel")),
    )(*args)

    sums = jnp.sum(partials[:, :, :, 0], axis=(0, 1))   # (3,): pos_loss, neg_loss, num_pos
    pos_s, neg_s, np_s = sums[0], sums[1], sums[2]
    safe_np = jnp.where(np_s == 0.0, 1.0, np_s)
    return jnp.where(np_s == 0.0, -neg_s, -(pos_s + neg_s) / safe_np)


def focal_loss_centernet(pred, gt, mask=None, hw_tile=None):
    """Pallas equivalent of FocalLossCenterNet.forward(out, target, mask)."""
    if mask is None:
        return _focal_loss_impl(pred, gt, None, has_mask=False, hw_tile=hw_tile)
    return _focal_loss_impl(pred, gt, mask, has_mask=True, hw_tile=hw_tile)


def _reference_loss(pred, gt, mask=None):
    """Pure-JAX reference mirroring neg_loss_cornernet exactly (f32)."""
    pred = pred.astype(jnp.float32)
    gt = gt.astype(jnp.float32)
    pos_inds = (gt == 1.0).astype(jnp.float32)
    neg_inds = (gt < 1.0).astype(jnp.float32)
    neg_weights = jnp.power(1.0 - gt, 4)
    pos_loss = jnp.log(pred) * jnp.power(1.0 - pred, 2) * pos_inds
    neg_loss = jnp.log(1.0 - pred) * jnp.power(pred, 2) * neg_weights * neg_inds
    if mask is not None:
        m = mask[:, None, :, :].astype(jnp.float32)
        pos_loss = pos_loss * m
        neg_loss = neg_loss * m
        num_pos = (pos_inds * m).sum()
    else:
        num_pos = pos_inds.sum()
    pos_loss = pos_loss.sum()
    neg_loss = neg_loss.sum()
    return jnp.where(num_pos == 0.0, -neg_loss, -(pos_loss + neg_loss) / num_pos)


if __name__ == "__main__":
    key = jax.random.PRNGKey(0)
    k1, k2, k3 = jax.random.split(key, 3)

    B, C, H, W = 2, 4, 16, 16

    # pred strictly inside (0, 1) (post-sigmoid heatmap), gt in [0, 1] with some exact 1s.
    pred = jax.random.uniform(k1, (B, C, H, W), jnp.float32, minval=0.01, maxval=0.99)
    raw = jax.random.uniform(k2, (B, C, H, W), jnp.float32)
    gt = jnp.where(raw > 0.95, 1.0, raw * 0.9)
    mask = (jax.random.uniform(k3, (B, H, W), jnp.float32) > 0.3).astype(jnp.float32)

    # Masked path (f32), single spatial block per batch.
    loss_masked = jax.block_until_ready(focal_loss_centernet(pred, gt, mask))
    ref_masked = _reference_loss(pred, gt, mask)
    assert jnp.allclose(loss_masked, ref_masked, rtol=1e-4, atol=1e-4), (
        loss_masked, ref_masked)

    # mask=None path (specialized kernel, f32).
    loss_nomask = jax.block_until_ready(focal_loss_centernet(pred, gt, None))
    ref_nomask = _reference_loss(pred, gt, None)
    assert jnp.allclose(loss_nomask, ref_nomask, rtol=1e-4, atol=1e-4), (
        loss_nomask, ref_nomask)

    # Force the spatially-tiled path (H*W = 256 -> two 128-lane tiles per batch).
    loss_tiled = jax.block_until_ready(focal_loss_centernet(pred, gt, mask, hw_tile=128))
    assert jnp.allclose(loss_tiled, ref_masked, rtol=1e-4, atol=1e-4), (
        loss_tiled, ref_masked)

    # bf16 inputs (kernel widens to f32 internally); compare against the f32
    # reference evaluated on the same bf16-rounded values.
    pred_bf = pred.astype(jnp.bfloat16)
    gt_bf = gt.astype(jnp.bfloat16)
    mask_bf = mask.astype(jnp.bfloat16)
    loss_bf = jax.block_until_ready(focal_loss_centernet(pred_bf, gt_bf, mask_bf))
    ref_bf = _reference_loss(pred_bf.astype(jnp.float32),
                             gt_bf.astype(jnp.float32),
                             mask_bf.astype(jnp.float32))
    assert jnp.allclose(loss_bf, ref_bf, rtol=1e-4, atol=1e-4), (loss_bf, ref_bf)

    # Edge case: no positives -> loss = -neg_loss (exercises the num_pos==0 branch).
    gt_nopos = jnp.minimum(gt, 0.9)
    loss_np0 = jax.block_until_ready(focal_loss_centernet(pred, gt_nopos, mask))
    ref_np0 = _reference_loss(pred, gt_nopos, mask)
    assert jnp.allclose(loss_np0, ref_np0, rtol=1e-4, atol=1e-4), (loss_np0, ref_np0)

    print("KERNEL_OK")
</pallas_src>

<mosaic_0001>
module attributes {stable_mosaic.version = 11 : i64} {
  func.func @_masked_kernel(%arg0: i32, %arg1: i32, %arg2: memref<1x4x256xf32, #tpu.memory_space<vmem>>, %arg3: memref<1x4x256xf32, #tpu.memory_space<vmem>>, %arg4: memref<1x1x256xf32, #tpu.memory_space<vmem>>, %arg5: memref<1x1x3x128xf32, #tpu.memory_space<vmem>>) attributes {dimension_semantics = [#tpu.dimension_semantics<parallel>, #tpu.dimension_semantics<parallel>], iteration_bounds = array<i64: 2, 1>, scalar_prefetch = 0 : i64, scratch_operands = 0 : i64, tpu.core_type = #tpu.core_type<tc>, window_params = [{transform_indices = @transform_0, window_bounds = array<i64: 1, 4, 256>}, {transform_indices = @transform_1, window_bounds = array<i64: 1, 4, 256>}, {transform_indices = @transform_2, window_bounds = array<i64: 1, 1, 256>}, {transform_indices = @transform_3, window_bounds = array<i64: 1, 1, 3, 128>}]} {
    %c0 = arith.constant 0 : index
    %c0_0 = arith.constant 0 : index
    %c0_1 = arith.constant 0 : index
    %0 = vector.load %arg4[%c0, %c0_0, %c0_1] : memref<1x1x256xf32, #tpu.memory_space<vmem>>, vector<1x1x256xf32>
    %1 = vector.shape_cast %0 : vector<1x1x256xf32> to vector<1x256xf32>
    %c0_2 = arith.constant 0 : index
    %c0_3 = arith.constant 0 : index
    %c0_4 = arith.constant 0 : index
    %2 = vector.load %arg2[%c0_2, %c0_3, %c0_4] : memref<1x4x256xf32, #tpu.memory_space<vmem>>, vector<1x4x256xf32>
    %3 = vector.shape_cast %2 : vector<1x4x256xf32> to vector<4x256xf32>
    %c0_5 = arith.constant 0 : index
    %c0_6 = arith.constant 0 : index
    %c0_7 = arith.constant 0 : index
    %4 = vector.load %arg3[%c0_5, %c0_6, %c0_7] : memref<1x4x256xf32, #tpu.memory_space<vmem>>, vector<1x4x256xf32>
    %5 = vector.shape_cast %4 : vector<1x4x256xf32> to vector<4x256xf32>
    %cst = arith.constant 1.000000e+00 : f32
    %6 = vector.broadcast %cst : f32 to vector<4x256xf32>
    %7 = arith.cmpf oeq, %5, %6 : vector<4x256xf32>
    %cst_8 = arith.constant 1.000000e+00 : f32
    %8 = vector.broadcast %cst_8 : f32 to vector<4x256xf32>
    %9 = arith.cmpf olt, %5, %8 : vector<4x256xf32>
    %cst_9 = arith.constant 1.000000e+00 : f32
    %10 = vector.broadcast %cst_9 : f32 to vector<4x256xf32>
    %11 = arith.subf %10, %3 : vector<4x256xf32>
    %12 = arith.select %7, %3, %11 : vector<4x256xi1>, vector<4x256xf32>
    %13 = math.log %12 : vector<4x256xf32>
    %cst_10 = arith.constant 1.000000e+00 : f32
    %14 = vector.broadcast %cst_10 : f32 to vector<4x256xf32>
    %15 = arith.subf %14, %3 : vector<4x256xf32>
    %cst_11 = arith.constant 1.000000e+00 : f32
    %16 = vector.broadcast %cst_11 : f32 to vector<4x256xf32>
    %17 = arith.subf %16, %5 : vector<4x256xf32>
    %18 = arith.mulf %17, %17 : vector<4x256xf32>
    %19 = arith.mulf %18, %18 : vector<4x256xf32>
    %20 = arith.mulf %15, %15 : vector<4x256xf32>
    %21 = arith.mulf %13, %20 : vector<4x256xf32>
    %22 = arith.mulf %3, %3 : vector<4x256xf32>
    %23 = arith.mulf %13, %22 : vector<4x256xf32>
    %24 = arith.mulf %23, %19 : vector<4x256xf32>
    %cst_12 = arith.constant 0.000000e+00 : f32
    %25 = vector.broadcast %cst_12 : f32 to vector<4x256xf32>
    %26 = arith.select %7, %21, %25 : vector<4x256xi1>, vector<4x256xf32>
    %cst_13 = arith.constant 0.000000e+00 : f32
    %27 = vector.broadcast %cst_13 : f32 to vector<4x256xf32>
    %28 = arith.select %9, %24, %27 : vector<4x256xi1>, vector<4x256xf32>
    %29 = vector.broadcast %1 : vector<1x256xf32> to vector<4x256xf32>
    %30 = arith.mulf %26, %29 : vector<4x256xf32>
    %31 = vector.broadcast %1 : vector<1x256xf32> to vector<4x256xf32>
    %32 = arith.mulf %28, %31 : vector<4x256xf32>
    %33 = arith.extui %7 : vector<4x256xi1> to vector<4x256xi32>
    %34 = arith.sitofp %33 : vector<4x256xi32> to vector<4x256xf32>
    %35 = vector.broadcast %1 : vector<1x256xf32> to vector<4x256xf32>
    %36 = arith.mulf %34, %35 : vector<4x256xf32>
    %37 = vector.shape_cast %30 : vector<4x256xf32> to vector<1x4x256xf32>
    %cst_14 = arith.constant dense<0.000000e+00> : vector<1xf32>
    %38 = vector.multi_reduction <add>, %37, %cst_14 [1, 2] : vector<1x4x256xf32> to vector<1xf32>
    %39 = vector.shape_cast %38 : vector<1xf32> to vector<1x1x1xf32>
    %40 = vector.extract %39[0, 0, 0] : f32 from vector<1x1x1xf32>
    %41 = vector.shape_cast %32 : vector<4x256xf32> to vector<1x4x256xf32>
    %cst_15 = arith.constant dense<0.000000e+00> : vector<1xf32>
    %42 = vector.multi_reduction <add>, %41, %cst_15 [1, 2] : vector<1x4x256xf32> to vector<1xf32>
    %43 = vector.shape_cast %42 : vector<1xf32> to vector<1x1x1xf32>
    %44 = vector.extract %43[0, 0, 0] : f32 from vector<1x1x1xf32>
    %45 = vector.shape_cast %36 : vector<4x256xf32> to vector<1x4x256xf32>
    %cst_16 = arith.constant dense<0.000000e+00> : vector<1xf32>
    %46 = vector.multi_reduction <add>, %45, %cst_16 [1, 2] : vector<1x4x256xf32> to vector<1xf32>
    %47 = vector.shape_cast %46 : vector<1xf32> to vector<1x1x1xf32>
    %48 = vector.extract %47[0, 0, 0] : f32 from vector<1x1x1xf32>
    %49 = vector.broadcast %40 : f32 to vector<1x128xf32>
    %c0_17 = arith.constant 0 : index
    %c0_18 = arith.constant 0 : index
    %c0_19 = arith.constant 0 : index
    %c0_20 = arith.constant 0 : index
    %50 = vector.load %arg5[%c0_17, %c0_18, %c0_19, %c0_20] : memref<1x1x3x128xf32, #tpu.memory_space<vmem>>, vector<1x1x1x128xf32>
    %51 = vector.shape_cast %50 : vector<1x1x1x128xf32> to vector<1x128xf32>
    %52 = vector.shape_cast %49 : vector<1x128xf32> to vector<1x1x1x128xf32>
    tpu.vector_store %arg5[%c0_17, %c0_18, %c0_19, %c0_20], %52 {strides = array<i32>} : memref<1x1x3x128xf32, #tpu.memory_space<vmem>>, vector<1x1x1x128xf32>,
    %53 = vector.broadcast %44 : f32 to vector<1x128xf32>
    %c0_21 = arith.constant 0 : index
    %c0_22 = arith.constant 0 : index
    %c1 = arith.constant 1 : index
    %c0_23 = arith.constant 0 : index
    %54 = vector.load %arg5[%c0_21, %c0_22, %c1, %c0_23] : memref<1x1x3x128xf32, #tpu.memory_space<vmem>>, vector<1x1x1x128xf32>
    %55 = vector.shape_cast %54 : vector<1x1x1x128xf32> to vector<1x128xf32>
    %56 = vector.shape_cast %53 : vector<1x128xf32> to vector<1x1x1x128xf32>
    tpu.vector_store %arg5[%c0_21, %c0_22, %c1, %c0_23], %56 {strides = array<i32>} : memref<1x1x3x128xf32, #tpu.memory_space<vmem>>, vector<1x1x1x128xf32>,
    %57 = vector.broadcast %48 : f32 to vector<1x128xf32>
    %c0_24 = arith.constant 0 : index
    %c0_25 = arith.constant 0 : index
    %c2 = arith.constant 2 : index
    %c0_26 = arith.constant 0 : index
    %58 = vector.load %arg5[%c0_24, %c0_25, %c2, %c0_26] : memref<1x1x3x128xf32, #tpu.memory_space<vmem>>, vector<1x1x1x128xf32>
    %59 = vector.shape_cast %58 : vector<1x1x1x128xf32> to vector<1x128xf32>
    %60 = vector.shape_cast %57 : vector<1x128xf32> to vector<1x1x1x128xf32>
    tpu.vector_store %arg5[%c0_24, %c0_25, %c2, %c0_26], %60 {strides = array<i32>} : memref<1x1x3x128xf32, #tpu.memory_space<vmem>>, vector<1x1x1x128xf32>,
    return
  }
  func.func @transform_0(%arg0: i32, %arg1: i32) -> (i32, i32, i32) {
    %c0_i32 = arith.constant 0 : i32
    %c0_i32_0 = arith.constant 0 : i32
    return %arg0, %c0_i32, %arg1 : i32, i32, i32
  }
  func.func @transform_1(%arg0: i32, %arg1: i32) -> (i32, i32, i32) {
    %c0_i32 = arith.constant 0 : i32
    %c0_i32_0 = arith.constant 0 : i32
    return %arg0, %c0_i32, %arg1 : i32, i32, i32
  }
  func.func @transform_2(%arg0: i32, %arg1: i32) -> (i32, i32, i32) {
    %c0_i32 = arith.constant 0 : i32
    %c0_i32_0 = arith.constant 0 : i32
    return %arg0, %c0_i32, %arg1 : i32, i32, i32
  }
  func.func @transform_3(%arg0: i32, %arg1: i32) -> (i32, i32, i32, i32) {
    %c0_i32 = arith.constant 0 : i32
    %c0_i32_0 = arith.constant 0 : i32
    %c0_i32_1 = arith.constant 0 : i32
    return %arg0, %arg1, %c0_i32, %c0_i32_0 : i32, i32, i32, i32
  }
}

</mosaic_0001>

<llo_original>
// kernel: _focal_loss_impl.1
$region0: #{_focal_loss_impl.1}
  #allocation0 [shape = 'u32[]', space=smem, size = 0x4, offset = 0x4, fixed_abs, tag = 'smem constant byte address 0x4 - core index']
  #allocation1 [shape = 'u32[144,128]{1,0:T(1,128)}', space=vmem, size = 0x12000, scoped, tag = 'internal scratch']
  %s0 = inlined_call_operand.vmem [shape: f32[2,4,256], index: 0, kind: input, shape index: {}]
  %s1 = inlined_call_operand.vmem [shape: f32[2,4,256], index: 1, kind: input, shape index: {}]
  %s2 = inlined_call_operand.vmem [shape: f32[2,1,256], index: 2, kind: input, shape index: {}]
  %s3 = inlined_call_operand.vmem [shape: f32[2,1,3,128], index: 3, kind: output, shape index: {}]
  %s4 = sld [smem:[#allocation0]]
  $region45: #{_focal_loss_impl.1} parent=0
    _
  %s6 = ssub.s32 1, %s4
  %s7 = scalar_select 0, %s6, %s4
  loop: start=0, step=1, limit=4
  $region2: #{_focal_loss_impl.1} parent=0 // loop_pre_header
    _
  $region3: #{_focal_loss_impl.1} parent=0 // loop_header
    %s9 = sphi 0, %s13
    %p10 = scmp.ge.s32.totalorder %s9, 4
    %s16 = sphi 0, %s28
    %s17 = sphi 0, %s24
    %s18 = sphi 0, %s16
    %s19 = sphi 0, %s17
    %s20 = sphi 0, %s18
    %s21 = sphi 0, %s19
    %s33 = sphi 0, %s35
    %s36 = sphi 0, %s33
    %s37 = sphi 0, %s36
    %s53 = sphi 0, %s37
    %s61 = sphi 0, %s63
    %s64 = sphi 0, %s61
    %s65 = sphi 0, %s64
    %s81 = sphi 0, %s65
    %s89 = sphi 0, %s91
    %s92 = sphi 0, %s89
    %s93 = sphi 0, %s92
    %s109 = sphi 0, %s93
    %s117 = sphi 0, %s119
    %s120 = sphi 0, %s117
    %s121 = sphi 0, %s120
    %s137 = sphi 0, %s121
  $region4: #{_focal_loss_impl.1} parent=0 // loop_header_branch
    %12 = sbr.rel (%p10) target = $region8
  $region5: #{_focal_loss_impl.1} parent=0 // loop_body
    %s14 = ssub.s32 %s9, 1
    %s15 = ssub.s32 %s9, 2
    %s22 = sadd.s32 1, %s17
    %p23 = scmp.ge.s32.totalorder %s22, 1
    %s24 = scalar_select %p23, 0, %s22
    %s25 = sadd.s32 1, %s16
    %s26 = scalar_select %p23, %s25, %s16
    %p27 = scmp.ge.s32.totalorder %s26, 2
    %s28 = scalar_select %p27, 0, %s26
    %s29 = ssub.s32 %s16, %s28
    %s30 = ssub.s32 %s17, %s24
    %s31 = sor.u32 %s29, %s30
    %p32 = scmp.eq.s32.totalorder %s31, 0
    %s34 = sadd.s32 %s33, 1
    %s35 = scalar_select %p32, %s33, %s34
    %p38 = pneg %p32
    %p39 = scmp.eq.s32.totalorder %s9, 1
    %p40 = por %p38, %p39
    %p41 = scmp.ne.s32.totalorder %s33, %s36
    %p42 = scmp.eq.s32.totalorder %s9, 0
    %p43 = por %p41, %p42
    %p44 = scmp.ne.s32.totalorder %s33, %s36
    %p45 = scmp.eq.s32.totalorder %s14, 1
    %p46 = por %p44, %p45
    %p47 = scmp.ne.s32.totalorder %s36, %s37
    %p48 = scmp.eq.s32.totalorder %s14, 0
    %p49 = por %p47, %p48
    %p50 = scmp.ne.s32.totalorder %s36, %s37
    %p51 = scmp.eq.s32.totalorder %s15, 1
    %p52 = por %p50, %p51
    %p54 = scmp.ne.s32.totalorder %s37, %s53
    %p55 = scmp.eq.s32.totalorder %s15, 0
    %p56 = por %p54, %p55
    %s57 = ssub.s32 %s16, %s28
    %s58 = ssub.s32 %s17, %s24
    %s59 = sor.u32 %s57, %s58
    %p60 = scmp.eq.s32.totalorder %s59, 0
    %s62 = sadd.s32 %s61, 1
    %s63 = scalar_select %p60, %s61, %s62
    %p66 = pneg %p60
    %p67 = scmp.eq.s32.totalorder %s9, 1
    %p68 = por %p66, %p67
    %p69 = scmp.ne.s32.totalorder %s61, %s64
    %p70 = scmp.eq.s32.totalorder %s9, 0
    %p71 = por %p69, %p70
    %p72 = scmp.ne.s32.totalorder %s61, %s64
    %p73 = scmp.eq.s32.totalorder %s14, 1
    %p74 = por %p72, %p73
    %p75 = scmp.ne.s32.totalorder %s64, %s65
    %p76 = scmp.eq.s32.totalorder %s14, 0
    %p77 = por %p75, %p76
    %p78 = scmp.ne.s32.totalorder %s64, %s65
    %p79 = scmp.eq.s32.totalorder %s15, 1
    %p80 = por %p78, %p79
    %p82 = scmp.ne.s32.totalorder %s65, %s81
    %p83 = scmp.eq.s32.totalorder %s15, 0
    %p84 = por %p82, %p83
    %s85 = ssub.s32 %s16, %s28
    %s86 = ssub.s32 %s17, %s24
    %s87 = sor.u32 %s85, %s86
    %p88 = scmp.eq.s32.totalorder %s87, 0
    %s90 = sadd.s32 %s89, 1
    %s91 = scalar_select %p88, %s89, %s90
    %p94 = pneg %p88
    %p95 = scmp.eq.s32.totalorder %s9, 1
    %p96 = por %p94, %p95
    %p97 = scmp.ne.s32.totalorder %s89, %s92
    %p98 = scmp.eq.s32.totalorder %s9, 0
    %p99 = por %p97, %p98
    %p100 = scmp.ne.s32.totalorder %s89, %s92
    %p101 = scmp.eq.s32.totalorder %s14, 1
    %p102 = por %p100, %p101
    %p103 = scmp.ne.s32.totalorder %s92, %s93
    %p104 = scmp.eq.s32.totalorder %s14, 0
    %p105 = por %p103, %p104
    %p106 = scmp.ne.s32.totalorder %s92, %s93
    %p107 = scmp.eq.s32.totalorder %s15, 1
    %p108 = por %p106, %p107
    %p110 = scmp.ne.s32.totalorder %s93, %s109
    %p111 = scmp.eq.s32.totalorder %s15, 0
    %p112 = por %p110, %p111
    %s113 = ssub.s32 %s16, %s28
    %s114 = ssub.s32 %s17, %s24
    %s115 = sor.u32 %s113, %s114
    %p116 = scmp.eq.s32.totalorder %s115, 0
    %s118 = sadd.s32 %s117, 1
    %s119 = scalar_select %p116, %s117, %s118
    %p122 = pneg %p116
    %p123 = scmp.eq.s32.totalorder %s9, 1
    %p124 = por %p122, %p123
    %p125 = scmp.ne.s32.totalorder %s117, %s120
    %p126 = scmp.eq.s32.totalorder %s9, 0
    %p127 = por %p125, %p126
    %p128 = scmp.ne.s32.totalorder %s117, %s120
    %p129 = scmp.eq.s32.totalorder %s14, 1
    %p130 = por %p128, %p129
    %p131 = scmp.ne.s32.totalorder %s120, %s121
    %p132 = scmp.eq.s32.totalorder %s14, 0
    %p133 = por %p131, %p132
    %p134 = scmp.ne.s32.totalorder %s120, %s121
    %p135 = scmp.eq.s32.totalorder %s15, 1
    %p136 = por %p134, %p135
    %p138 = scmp.ne.s32.totalorder %s121, %s137
    %p139 = scmp.eq.s32.totalorder %s15, 0
    %p140 = por %p138, %p139
    %p141 = scmp.le.s32.totalorder 1, %s9
    %p142 = scmp.lt.s32.totalorder %s9, 3
    %p143 = pnand %p141, %p142
    %p144 = pneg %p143
    // Predicated region
    $region9: #{_focal_loss_impl.1} parent=5 // pred_check
      _
    $region10: #{_focal_loss_impl.1} parent=5 // pred_check_branch
      %146 = sbr.rel (%p143) target = $region12
    $region11: #{_focal_loss_impl.1} parent=5 // pred_region
      %s147 = ssub.s32 %s9, 1
    $region12: #{_focal_loss_impl.1} parent=5 // pred_fallthru
      _
    %p148 = scmp.lt.s32.totalorder %s9, 2
    // Predicated region
    $region13: #{_focal_loss_impl.1} parent=5 // pred_check
      %p149 = pneg %p148
    $region14: #{_focal_loss_impl.1} parent=5 // pred_check_branch
      %151 = sbr.rel (%p149) target = $region16
    $region15: #{_focal_loss_impl.1} parent=5 // pred_region
      // Predicated region
      $region17: #{_focal_loss_impl.1} parent=15 // pred_check
        %p152 = pneg %p43
      $region18: #{_focal_loss_impl.1} parent=15 // pred_check_branch
        %154 = sbr.rel (%p152) target = $region20
      $region19: #{_focal_loss_impl.1} parent=15 // pred_region
        %s155 = smul.u32 2, %s17
        %p156 = scmp.lt.s32.totalorder %s16, 1
        %s157 = scalar_select %p156, %s16, 1
        %p158 = scmp.lt.s32.totalorder %s155, 1
        %s159 = scalar_select %p158, %s155, 1
        %s160 = smul.addr %s157, 2
        %s161 = sadd.s32 %s159, %s160
        %s162 = smul.addr %s161, 4
        %s163 = scalar_lea.vmem %s0, %s162
        %s164 = smul.u32 2, %s17
      $region20: #{_focal_loss_impl.1} parent=15 // pred_fallthru
        _
      // Predicated region
      $region21: #{_focal_loss_impl.1} parent=15 // pred_check
        %p165 = pneg %p71
      $region22: #{_focal_loss_impl.1} parent=15 // pred_check_branch
        %167 = sbr.rel (%p165) target = $region24
      $region23: #{_focal_loss_impl.1} parent=15 // pred_region
        %s168 = smul.u32 2, %s17
        %p169 = scmp.lt.s32.totalorder %s16, 1
        %s170 = scalar_select %p169, %s16, 1
        %p171 = scmp.lt.s32.totalorder %s168, 1
        %s172 = scalar_select %p171, %s168, 1
        %s173 = smul.addr %s170, 2
        %s174 = sadd.s32 %s172, %s173
        %s175 = smul.addr %s174, 4
        %s176 = scalar_lea.vmem %s1, %s175
        %s177 = smul.u32 2, %s17
      $region24: #{_focal_loss_impl.1} parent=15 // pred_fallthru
        _
      // Predicated region
      $region25: #{_focal_loss_impl.1} parent=15 // pred_check
        %p178 = pneg %p99
      $region26: #{_focal_loss_impl.1} parent=15 // pred_check_branch
        %180 = sbr.rel (%p178) target = $region28
      $region27: #{_focal_loss_impl.1} parent=15 // pred_region
        %s181 = smul.u32 2, %s17
        %p182 = scmp.lt.s32.totalorder %s16, 1
        %s183 = scalar_select %p182, %s16, 1
        %p184 = scmp.lt.s32.totalorder %s181, 1
        %s185 = scalar_select %p184, %s181, 1
        %s186 = smul.addr %s183, 2
        %s187 = sadd.s32 %s185, %s186
        %s188 = scalar_lea.vmem %s2, %s187
        %s189 = smul.u32 2, %s17
      $region28: #{_focal_loss_impl.1} parent=15 // pred_fallthru
        _
    $region16: #{_focal_loss_impl.1} parent=5 // pred_fallthru
      _
    %p190 = scmp.le.s32.totalorder 1, %s9
    %p191 = scmp.lt.s32.totalorder %s9, 3
    %p192 = pnand %p190, %p191
    %p193 = pneg %p192
    // Predicated region
    $region29: #{_focal_loss_impl.1} parent=5 // pred_check
      _
    $region30: #{_focal_loss_impl.1} parent=5 // pred_check_branch
      %195 = sbr.rel (%p192) target = $region32
    $region31: #{_focal_loss_impl.1} parent=5 // pred_region
      %s196 = ssub.s32 %s9, 1
      %s197 = smul.u32 2, %s19
      %p198 = scmp.lt.s32.totalorder %s18, 1
      %s199 = scalar_select %p198, %s18, 1
      %p200 = scmp.lt.s32.totalorder %s197, 1
      %s201 = scalar_select %p200, %s197, 1
      %s202 = smul.addr %s199, 2
      %s203 = sadd.s32 %s201, %s202
      %s204 = smul.addr %s203, 4
      %s205 = scalar_lea.vmem %s0, %s204
      %p206 = pneg %p49
      %p207 = pneg %p46
      %s208 = smul.u32 2, %s19
      %p209 = scmp.lt.s32.totalorder %s18, 1
      %s210 = scalar_select %p209, %s18, 1
      %p211 = scmp.lt.s32.totalorder %s208, 1
      %s212 = scalar_select %p211, %s208, 1
      %s213 = smul.addr %s210, 2
      %s214 = sadd.s32 %s212, %s213
      %s215 = smul.addr %s214, 4
      %s216 = scalar_lea.vmem %s1, %s215
      %p217 = pneg %p77
      %p218 = pneg %p74
      %s219 = smul.u32 2, %s19
      %p220 = scmp.lt.s32.totalorder %s18, 1
      %s221 = scalar_select %p220, %s18, 1
      %p222 = scmp.lt.s32.totalorder %s219, 1
      %s223 = scalar_select %p222, %s219, 1
      %s224 = smul.addr %s221, 2
      %s225 = sadd.s32 %s223, %s224
      %s226 = scalar_lea.vmem %s2, %s225
      %p227 = pneg %p105
      %p228 = pneg %p102
      %p229 = pneg %p133
      %p230 = pneg %p130
      %p231 = scmp.lt.s32.totalorder %s18, 1
      %s232 = scalar_select %p231, %s18, 1
      %p233 = scmp.lt.s32.totalorder %s19, 0
      %s234 = scalar_select %p233, %s19, 0
      %s235 = sadd.s32 %s234, %s232
      %s236 = smul.addr %s235, 4
      %s237 = scalar_lea.vmem %s3, %s236
      %s238 = smul.u32 2, %s19
      %p239 = scmp.lt.s32.totalorder %s18, 1
      %s240 = scalar_select %p239, %s18, 1
      %p241 = scmp.lt.s32.totalorder %s238, 1
      %s242 = scalar_select %p241, %s238, 1
      %s243 = smul.addr %s240, 2
      %s244 = sadd.s32 %s242, %s243
      %s245 = smul.addr %s244, 4
      %s246 = scalar_lea.vmem %s0, %s245
      %s247 = smul.u32 2, %s19
      %s248 = smul.u32 2, %s19
      %p249 = scmp.lt.s32.totalorder %s18, 1
      %s250 = scalar_select %p249, %s18, 1
      %p251 = scmp.lt.s32.totalorder %s248, 1
      %s252 = scalar_select %p251, %s248, 1
      %s253 = smul.addr %s250, 2
      %s254 = sadd.s32 %s252, %s253
      %s255 = smul.addr %s254, 4
      %s256 = scalar_lea.vmem %s1, %s255
      %s257 = smul.u32 2, %s19
      %s258 = smul.u32 2, %s19
      %p259 = scmp.lt.s32.totalorder %s18, 1
      %s260 = scalar_select %p259, %s18, 1
      %p261 = scmp.lt.s32.totalorder %s258, 1
      %s262 = scalar_select %p261, %s258, 1
      %s263 = smul.addr %s260, 2
      %s264 = sadd.s32 %s262, %s263
      %s265 = scalar_lea.vmem %s2, %s264
      %s266 = smul.u32 2, %s19
      %p267 = scmp.lt.s32.totalorder %s18, 1
      %s268 = scalar_select %p267, %s18, 1
      %p269 = scmp.lt.s32.totalorder %s19, 0
      %s270 = scalar_select %p269, %s19, 0
      %s271 = sadd.s32 %s270, %s268
      %s272 = smul.addr %s271, 4
      %s273 = scalar_lea.vmem %s3, %s272
      %v274 = vld [vmem:[%s265] sm:$0x3]
      %v275 = vld [vmem:[%s246] sm:$0xff]
      %v276 = vld [vmem:[%s256] sm:$0xff]
      %vm277 = vcmp.eq.f32.partialorder %v276, 1.0
      %vm278 = vcmp.lt.f32.partialorder %v276, 1.0
      %v279 = vsub.f32 1.0, %v275
      %v280 = vsel %vm277, %v275, %v279
      %v281 = vlog2.pop %v280
      %v282 = vmul.f32 %v281, 0.6931472
      %v283 = vsub.f32 1.0, %v276
      %v284 = vmul.f32 %v283, %v283
      %v285 = vmul.f32 %v284, %v284
      %v286 = vmul.f32 %v279, %v279
      %v287 = vmul.f32 %v282, %v286
      %v288 = vmul.f32 %v275, %v275
      %v289 = vmul.f32 %v282, %v288
      %v290 = vmul.f32 %v289, %v285
      %v291 = vsel %vm277, %v287, 0.0
      %v292 = vsel %vm278, %v290, 0.0
      %v294 = vlaneseq
      %v295 = vshrl.u32 %v294, 7
      %v296 = vsub.s32 0, %v295
      %v297 = vrot.slane %v274, %v296
      %v298 = vlaneseq
      %v299 = vshrl.u32 %v298, 7
      %v300 = vsub.s32 1, %v299
      %v301 = vrot.slane %v274, %v300
      %v302 = vcombine.low %v297, %v301
      %v304 = vmul.f32 %v291, %v302
      %v305 = vmul.f32 %v292, %v302
      %v306 = vsel %vm277, 1, 0
      %v307 = vcvt.s32.f32 %v306
      %v308 = vmul.f32 %v307, %v302
      %v310 = vcombine.high %v304, %v304
      %vm312 = vcmask 1043456
      %v313 = vsel %vm312, %v304, 0.0
      %v314 = vsel %vm312, %v310, 0.0
      %v315 = vadd.f32 %v313, %v314
      %316 = vadd.xlane.f32.xlu0 %v315
      %v317 = vpop.xlane.xlu0 %316
      %v318 = vrot.slane %v317, 4
      %v319 = vadd.f32 %v317, %v318
      %v320 = vrot.slane %v319, 2
      %v321 = vadd.f32 %v319, %v320
      %v322 = vrot.slane %v321, 1
      %v323 = vadd.f32 %v321, %v322
      %s324 = vtos %v323
      %v326 = vcombine.high %v305, %v305
      %v328 = vsel %vm312, %v305, 0.0
      %v329 = vsel %vm312, %v326, 0.0
      %v330 = vadd.f32 %v328, %v329
      %331 = vadd.xlane.f32.xlu0 %v330
      %v332 = vpop.xlane.xlu0 %331
      %v333 = vrot.slane %v332, 4
      %v334 = vadd.f32 %v332, %v333
      %v335 = vrot.slane %v334, 2
      %v336 = vadd.f32 %v334, %v335
      %v337 = vrot.slane %v336, 1
      %v338 = vadd.f32 %v336, %v337
      %s339 = vtos %v338
      %v341 = vcombine.high %v308, %v308
      %v343 = vsel %vm312, %v308, 0.0
      %v344 = vsel %vm312, %v341, 0.0
      %v345 = vadd.f32 %v343, %v344
      %346 = vadd.xlane.f32.xlu0 %v345
      %v347 = vpop.xlane.xlu0 %346
      %v348 = vrot.slane %v347, 4
      %v349 = vadd.f32 %v347, %v348
      %v350 = vrot.slane %v349, 2
      %v351 = vadd.f32 %v349, %v350
      %v352 = vrot.slane %v351, 1
      %v353 = vadd.f32 %v351, %v352
      %s354 = vtos %v353
      %v355 = vstv %s324
      %356 = vst [vmem:[%s273] sm:$0x1] %v355
      %v357 = vstv %s339
      %358 = vst [vmem:[%s273 + $0x1] sm:$0x1] %v357
      %v359 = vstv %s354
      %360 = vst [vmem:[%s273 + $0x2] sm:$0x1] %v359
      %p361 = scmp.lt.s32.totalorder %s18, 1
      %s362 = scalar_select %p361, %s18, 1
      %p363 = scmp.lt.s32.totalorder %s19, 0
      %s364 = scalar_select %p363, %s19, 0
      %s365 = sadd.s32 %s364, %s362
      %s366 = smul.addr %s365, 4
      %s367 = scalar_lea.vmem %s3, %s366
      // Predicated region
      $region33: #{_focal_loss_impl.1} parent=31 // pred_check
        %p368 = pneg %p130
      $region34: #{_focal_loss_impl.1} parent=31 // pred_check_branch
        %370 = sbr.rel (%p368) target = $region36
      $region35: #{_focal_loss_impl.1} parent=31 // pred_region
        _
      $region36: #{_focal_loss_impl.1} parent=31 // pred_fallthru
        _
    $region32: #{_focal_loss_impl.1} parent=5 // pred_fallthru
      _
    %p371 = scmp.le.s32.totalorder 2, %s9
    // Predicated region
    $region37: #{_focal_loss_impl.1} parent=5 // pred_check
      %p372 = pneg %p371
    $region38: #{_focal_loss_impl.1} parent=5 // pred_check_branch
      %374 = sbr.rel (%p372) target = $region40
    $region39: #{_focal_loss_impl.1} parent=5 // pred_region
      %s375 = ssub.s32 %s9, 2
      // Predicated region
      $region41: #{_focal_loss_impl.1} parent=39 // pred_check
        %p376 = pneg %p136
      $region42: #{_focal_loss_impl.1} parent=39 // pred_check_branch
        %378 = sbr.rel (%p376) target = $region44
      $region43: #{_focal_loss_impl.1} parent=39 // pred_region
        %p379 = scmp.lt.s32.totalorder %s20, 1
        %s380 = scalar_select %p379, %s20, 1
        %p381 = scmp.lt.s32.totalorder %s21, 0
        %s382 = scalar_select %p381, %s21, 0
        %s383 = sadd.s32 %s382, %s380
        %s384 = smul.addr %s383, 4
        %s385 = scalar_lea.vmem %s3, %s384
      $region44: #{_focal_loss_impl.1} parent=39 // pred_fallthru
        _
    $region40: #{_focal_loss_impl.1} parent=5 // pred_fallthru
      _
  $region6: #{_focal_loss_impl.1} parent=0 // loop_footer
    %s13 = sadd.s32 1, %s9
  $region7: #{_focal_loss_impl.1} parent=0 // loop_footer_branch
    %8 = sbr.rel target = $region3
  $region8: #{_focal_loss_impl.1} parent=0 // loop_exit
    _

</llo_original>
